<compile_context>
chip_gen: v7x
topology: tpu7x:2x2x1
jax: 0.10.0
libtpu: 0.0.40
codegen_flags: <defaults>
</compile_context>

<pallas_src>
import jax
import jax.numpy as jnp
from jax.experimental import pallas as pl
from jax.experimental.pallas import tpu as pltpu

VOCAB = 256   # len(vocab) for this synthetic run
H1 = 128
H2 = 64
NCLS = 4
OUT_PAD = 128  # lane-dense output width; real logits live in [:, :NCLS]


def mlp_kernel(x_ref, w1_ref, b1_ref, w2_ref, b2_ref, w3_ref, b3_ref, o_ref):
    # Layer 1: Linear(V -> 128) + ReLU. bf16 operands, f32 MXU accumulation.
    h1 = jnp.dot(x_ref[...], w1_ref[...], preferred_element_type=jnp.float32)
    h1 = jnp.maximum(h1 + b1_ref[...], 0.0)
    # Layer 2: Linear(128 -> 64) + ReLU.
    h2 = jnp.dot(h1.astype(jnp.bfloat16), w2_ref[...],
                 preferred_element_type=jnp.float32)
    h2 = jnp.maximum(h2 + b2_ref[...], 0.0)
    # Layer 3: Linear(64 -> 4), zero-padded to 128 output lanes for dense vst stores.
    logits = jnp.dot(h2.astype(jnp.bfloat16), w3_ref[...],
                     preferred_element_type=jnp.float32)
    o_ref[...] = (logits + b3_ref[...]).astype(o_ref.dtype)


def _round_up(n, m):
    return ((n + m - 1) // m) * m


def text_classifier_forward(x, w1, b1, w2, b2, w3, b3, *, tb_max=256):
    """x: [B, VOCAB] f32. Weights stored [in, out]; biases [1, out]. Returns [B, 4] f32."""
    B, V = x.shape

    # Batch tile: multiple of 16 (bf16 sublane packing), capped at tb_max so the f32
    # h1 intermediate stays inside the vreg file, and >= 2 grid steps when B allows
    # (v7x megacore sharding via dimension_semantics=("parallel",)).
    if B >= 32:
        tb = min(tb_max, _round_up(pl.cdiv(B, 2), 16))
    else:
        tb = _round_up(max(B, 1), 16)
    B_pad = _round_up(B, tb)

    # bf16 matmul operands (native MXU rate on v6e/v7x, half the HBM bytes for x);
    # biases and accumulation stay f32.
    x_bf = x.astype(jnp.bfloat16)
    if B_pad != B:
        x_bf = jnp.pad(x_bf, ((0, B_pad - B), (0, 0)))
    w1_bf = w1.astype(jnp.bfloat16)
    w2_bf = w2.astype(jnp.bfloat16)
    # Lane-dense output: pad the 4-wide final layer to 128 output columns with zeros.
    w3_bf = jnp.pad(w3.astype(jnp.bfloat16), ((0, 0), (0, OUT_PAD - NCLS)))
    b3_p = jnp.pad(b3, ((0, 0), (0, OUT_PAD - NCLS)))

    grid = (B_pad // tb,)
    out_padded = pl.pallas_call(
        mlp_kernel,
        out_shape=jax.ShapeDtypeStruct((B_pad, OUT_PAD), jnp.float32),
        grid_spec=pltpu.PrefetchScalarGridSpec(
            num_scalar_prefetch=0,
            grid=grid,
            in_specs=[
                pl.BlockSpec((tb, V), lambda i: (i, 0)),        # x tile over batch
                pl.BlockSpec((V, H1), lambda i: (0, 0)),        # w1 (resident)
                pl.BlockSpec((1, H1), lambda i: (0, 0)),        # b1
                pl.BlockSpec((H1, H2), lambda i: (0, 0)),       # w2
                pl.BlockSpec((1, H2), lambda i: (0, 0)),        # b2
                pl.BlockSpec((H2, OUT_PAD), lambda i: (0, 0)),  # w3 (128-padded)
                pl.BlockSpec((1, OUT_PAD), lambda i: (0, 0)),   # b3 (128-padded)
            ],
            out_specs=pl.BlockSpec((tb, OUT_PAD), lambda i: (i, 0)),
        ),
        compiler_params=pltpu.CompilerParams(
            dimension_semantics=("parallel",),
        ),
    )(x_bf, w1_bf, b1, w2_bf, b2, w3_bf, b3_p)

    # TODO(synk): for a realistic vocab (30K+), split VOCAB with a K-reduction grid axis
    # and an f32 VMEM accumulator instead of keeping w1 fully resident (v7x 64 MiB VMEM).
    return out_padded[:B, :NCLS]


def init_params(key):
    # Deterministic synthetic init (uniform, PyTorch-Linear-like bounds), f32 master copies.
    ks = jax.random.split(key, 6)

    def unif(k, shape, fan_in):
        bound = 1.0 / jnp.sqrt(fan_in)
        return jax.random.uniform(k, shape, jnp.float32, -bound, bound)

    w1 = unif(ks[0], (VOCAB, H1), VOCAB)
    b1 = unif(ks[1], (1, H1), VOCAB)
    w2 = unif(ks[2], (H1, H2), H1)
    b2 = unif(ks[3], (1, H2), H1)
    w3 = unif(ks[4], (H2, NCLS), H2)
    b3 = unif(ks[5], (1, NCLS), H2)
    return w1, b1, w2, b2, w3, b3


if __name__ == "__main__":
    key = jax.random.PRNGKey(0)
    kx, kp = jax.random.split(key)

    B = 32  # small demo batch; wrapper picks tb=16 -> grid of 2 "parallel" steps
    x = jax.random.normal(kx, (B, VOCAB), dtype=jnp.float32)
    w1, b1, w2, b2, w3, b3 = init_params(kp)

    out = text_classifier_forward(x, w1, b1, w2, b2, w3, b3)
    out = jax.block_until_ready(out)
    assert out.shape == (B, NCLS)

    # Reference mirroring the kernel's bf16-operand / f32-accumulate numerics.
    def bf(a):
        return a.astype(jnp.bfloat16).astype(jnp.float32)

    h1 = jnp.maximum(bf(x) @ bf(w1) + b1, 0.0)
    h2 = jnp.maximum(bf(h1) @ bf(w2) + b2, 0.0)
    ref_bf = bf(h2) @ bf(w3) + b3
    assert jnp.allclose(out, ref_bf, atol=1e-3, rtol=1e-3)

    # Loose sanity check against the pure-f32 PyTorch-equivalent forward.
    h1f = jnp.maximum(x @ w1 + b1, 0.0)
    h2f = jnp.maximum(h1f @ w2 + b2, 0.0)
    ref_f32 = h2f @ w3 + b3
    assert jnp.allclose(out, ref_f32, atol=5e-2, rtol=5e-2)

    print("KERNEL_OK")
</pallas_src>

<mosaic_0001>
module attributes {stable_mosaic.version = 11 : i64} {
  func.func @mlp_kernel(%arg0: i32, %arg1: memref<16x256xbf16, #tpu.memory_space<vmem>>, %arg2: memref<256x128xbf16, #tpu.memory_space<vmem>>, %arg3: memref<1x128xf32, #tpu.memory_space<vmem>>, %arg4: memref<128x64xbf16, #tpu.memory_space<vmem>>, %arg5: memref<1x64xf32, #tpu.memory_space<vmem>>, %arg6: memref<64x128xbf16, #tpu.memory_space<vmem>>, %arg7: memref<1x128xf32, #tpu.memory_space<vmem>>, %arg8: memref<16x128xf32, #tpu.memory_space<vmem>>) attributes {dimension_semantics = [#tpu.dimension_semantics<parallel>], iteration_bounds = array<i64: 2>, scalar_prefetch = 0 : i64, scratch_operands = 0 : i64, tpu.core_type = #tpu.core_type<tc>, window_params = [{transform_indices = @transform_0, window_bounds = array<i64: 16, 256>}, {pipeline_mode = #tpu.pipeline_mode<synchronous>, transform_indices = @transform_1, window_bounds = array<i64: 256, 128>}, {pipeline_mode = #tpu.pipeline_mode<synchronous>, transform_indices = @transform_2, window_bounds = array<i64: 1, 128>}, {pipeline_mode = #tpu.pipeline_mode<synchronous>, transform_indices = @transform_3, window_bounds = array<i64: 128, 64>}, {pipeline_mode = #tpu.pipeline_mode<synchronous>, transform_indices = @transform_4, window_bounds = array<i64: 1, 64>}, {pipeline_mode = #tpu.pipeline_mode<synchronous>, transform_indices = @transform_5, window_bounds = array<i64: 64, 128>}, {pipeline_mode = #tpu.pipeline_mode<synchronous>, transform_indices = @transform_6, window_bounds = array<i64: 1, 128>}, {transform_indices = @transform_7, window_bounds = array<i64: 16, 128>}]} {
    %c0 = arith.constant 0 : index
    %c0_0 = arith.constant 0 : index
    %0 = vector.load %arg1[%c0, %c0_0] : memref<16x256xbf16, #tpu.memory_space<vmem>>, vector<16x256xbf16>
    %c0_1 = arith.constant 0 : index
    %c0_2 = arith.constant 0 : index
    %1 = vector.load %arg2[%c0_1, %c0_2] : memref<256x128xbf16, #tpu.memory_space<vmem>>, vector<256x128xbf16>
    %cst = arith.constant dense<0.000000e+00> : vector<16x128xf32>
    %2 = tpu.matmul %0, %1, %cst {dimension_numbers = #tpu.dot_dimension_numbers<[1], [0], [0], [1], [0, 0, 1, 1], [], []>} : vector<16x256xbf16>, vector<256x128xbf16>, vector<16x128xf32> -> vector<16x128xf32>
    %c0_3 = arith.constant 0 : index
    %c0_4 = arith.constant 0 : index
    %3 = vector.load %arg3[%c0_3, %c0_4] : memref<1x128xf32, #tpu.memory_space<vmem>>, vector<1x128xf32>
    %4 = vector.broadcast %3 : vector<1x128xf32> to vector<16x128xf32>
    %5 = arith.addf %2, %4 : vector<16x128xf32>
    %cst_5 = arith.constant 0.000000e+00 : f32
    %6 = vector.broadcast %cst_5 : f32 to vector<16x128xf32>
    %7 = arith.maximumf %5, %6 : vector<16x128xf32>
    %8 = arith.truncf %7 : vector<16x128xf32> to vector<16x128xbf16>
    %c0_6 = arith.constant 0 : index
    %c0_7 = arith.constant 0 : index
    %9 = vector.load %arg4[%c0_6, %c0_7] : memref<128x64xbf16, #tpu.memory_space<vmem>>, vector<128x64xbf16>
    %cst_8 = arith.constant dense<0.000000e+00> : vector<16x64xf32>
    %10 = tpu.matmul %8, %9, %cst_8 {dimension_numbers = #tpu.dot_dimension_numbers<[1], [0], [0], [1], [0, 0, 1, 1], [], []>} : vector<16x128xbf16>, vector<128x64xbf16>, vector<16x64xf32> -> vector<16x64xf32>
    %c0_9 = arith.constant 0 : index
    %c0_10 = arith.constant 0 : index
    %11 = vector.load %arg5[%c0_9, %c0_10] : memref<1x64xf32, #tpu.memory_space<vmem>>, vector<1x64xf32>
    %12 = vector.broadcast %11 : vector<1x64xf32> to vector<16x64xf32>
    %13 = arith.addf %10, %12 : vector<16x64xf32>
    %cst_11 = arith.constant 0.000000e+00 : f32
    %14 = vector.broadcast %cst_11 : f32 to vector<16x64xf32>
    %15 = arith.maximumf %13, %14 : vector<16x64xf32>
    %16 = arith.truncf %15 : vector<16x64xf32> to vector<16x64xbf16>
    %c0_12 = arith.constant 0 : index
    %c0_13 = arith.constant 0 : index
    %17 = vector.load %arg6[%c0_12, %c0_13] : memref<64x128xbf16, #tpu.memory_space<vmem>>, vector<64x128xbf16>
    %cst_14 = arith.constant dense<0.000000e+00> : vector<16x128xf32>
    %18 = tpu.matmul %16, %17, %cst_14 {dimension_numbers = #tpu.dot_dimension_numbers<[1], [0], [0], [1], [0, 0, 1, 1], [], []>} : vector<16x64xbf16>, vector<64x128xbf16>, vector<16x128xf32> -> vector<16x128xf32>
    %c0_15 = arith.constant 0 : index
    %c0_16 = arith.constant 0 : index
    %19 = vector.load %arg7[%c0_15, %c0_16] : memref<1x128xf32, #tpu.memory_space<vmem>>, vector<1x128xf32>
    %20 = vector.broadcast %19 : vector<1x128xf32> to vector<16x128xf32>
    %21 = arith.addf %18, %20 : vector<16x128xf32>
    %c0_17 = arith.constant 0 : index
    %c0_18 = arith.constant 0 : index
    %22 = vector.load %arg8[%c0_17, %c0_18] : memref<16x128xf32, #tpu.memory_space<vmem>>, vector<16x128xf32>
    tpu.vector_store %arg8[%c0_17, %c0_18], %21 {strides = array<i32>} : memref<16x128xf32, #tpu.memory_space<vmem>>, vector<16x128xf32>,
    return
  }
  func.func @transform_0(%arg0: i32) -> (i32, i32) {
    %c0_i32 = arith.constant 0 : i32
    %c0_i32_0 = arith.constant 0 : i32
    return %arg0, %c0_i32 : i32, i32
  }
  func.func @transform_1(%arg0: i32) -> (i32, i32) {
    %c0_i32 = arith.constant 0 : i32
    %c0_i32_0 = arith.constant 0 : i32
    %c0_i32_1 = arith.constant 0 : i32
    return %c0_i32, %c0_i32_0 : i32, i32
  }
  func.func @transform_2(%arg0: i32) -> (i32, i32) {
    %c0_i32 = arith.constant 0 : i32
    %c0_i32_0 = arith.constant 0 : i32
    %c0_i32_1 = arith.constant 0 : i32
    return %c0_i32, %c0_i32_0 : i32, i32
  }
  func.func @transform_3(%arg0: i32) -> (i32, i32) {
    %c0_i32 = arith.constant 0 : i32
    %c0_i32_0 = arith.constant 0 : i32
    %c0_i32_1 = arith.constant 0 : i32
    return %c0_i32, %c0_i32_0 : i32, i32
  }
  func.func @transform_4(%arg0: i32) -> (i32, i32) {
    %c0_i32 = arith.constant 0 : i32
    %c0_i32_0 = arith.constant 0 : i32
    %c0_i32_1 = arith.constant 0 : i32
    return %c0_i32, %c0_i32_0 : i32, i32
  }
  func.func @transform_5(%arg0: i32) -> (i32, i32) {
    %c0_i32 = arith.constant 0 : i32
    %c0_i32_0 = arith.constant 0 : i32
    %c0_i32_1 = arith.constant 0 : i32
    return %c0_i32, %c0_i32_0 : i32, i32
  }
  func.func @transform_6(%arg0: i32) -> (i32, i32) {
    %c0_i32 = arith.constant 0 : i32
    %c0_i32_0 = arith.constant 0 : i32
    %c0_i32_1 = arith.constant 0 : i32
    return %c0_i32, %c0_i32_0 : i32, i32
  }
  func.func @transform_7(%arg0: i32) -> (i32, i32) {
    %c0_i32 = arith.constant 0 : i32
    %c0_i32_0 = arith.constant 0 : i32
    return %arg0, %c0_i32 : i32, i32
  }
}

</mosaic_0001>

<llo_original>
// kernel: tpu_custom_call.1
$region0: #{tpu_custom_call.1}
  #allocation0 [shape = 'u32[]', space=smem, size = 0x4, offset = 0x4, fixed_abs, tag = 'smem constant byte address 0x4 - core index']
  #allocation1 [shape = 'u32[144,128]{1,0:T(1,128)}', space=vmem, size = 0x12000, scoped, tag = 'internal scratch']
  %s0 = inlined_call_operand.vmem [shape: bf16[32,256], index: 0, kind: input, shape index: {}]
  %s1 = inlined_call_operand.hbm [shape: bf16[256,128], index: 1, kind: input, shape index: {}]
  %s2 = inlined_call_operand.vmem [shape: f32[1,128], index: 2, kind: input, shape index: {}]
  %s3 = inlined_call_operand.vmem [shape: bf16[128,64], index: 3, kind: input, shape index: {}]
  %s4 = inlined_call_operand.vmem [shape: f32[1,64], index: 4, kind: input, shape index: {}]
  %s5 = inlined_call_operand.vmem [shape: bf16[64,128], index: 5, kind: input, shape index: {}]
  %s6 = inlined_call_operand.vmem [shape: f32[1,128], index: 6, kind: input, shape index: {}]
  %s7 = inlined_call_operand.hbm [shape: f32[32,128], index: 7, kind: output, shape index: {}]
  %s8 = sld [smem:[#allocation0]]
  $region65: #{tpu_custom_call.1} parent=0
    _
  %s10 = ssub.s32 1, %s8
  %s11 = scalar_select 0, %s10, %s8
  $region1: #{tpu_custom_call.1} parent=0
    #allocation2 [shape = 'u8[65536]{0}', space=vmem, size = 0x10000, scoped, tag = 'input window, operand 1, single buffered']
    #allocation3 [shape = 's32[2]{0}', space=sflag, size = 0x8, scoped, tag = 'scoped memory for tpu_custom_call.1']
    #allocation4 [shape = 's32[2]{0}', space=sflag, size = 0x8, scoped, tag = 'scoped memory for tpu_custom_call.1']
    #allocation5 [shape = 'u8[16384]{0}', space=vmem, size = 0x4000, scoped, tag = 'output window, operand 0']
    %12 = vsyncpa [#allocation3], 0
    %13 = vsyncpa [#allocation4], 0
    %s14 = scalar_lea.sflag [#allocation4], 1
    %15 = vsyncpa %s14, 0
    loop: start=0, step=1, limit=4
    $region2: #{tpu_custom_call.1} parent=1 // loop_pre_header
      _
    $region3: #{tpu_custom_call.1} parent=1 // loop_header
      %s17 = sphi 0, %s21
      %p18 = scmp.ge.s32.totalorder %s17, 4
      %s27 = sphi 0, %s29
      %s30 = sphi 0, %s27
      %s31 = sphi 0, %s30
      %s47 = sphi 0, %s31
      %s51 = sphi 0, %s51
      %s53 = sphi 0, %s51
      %s54 = sphi 0, %s53
      %s68 = sphi 0, %s54
      %s72 = sphi 0, %s72
      %s74 = sphi 0, %s72
      %s75 = sphi 0, %s74
      %s89 = sphi 0, %s75
      %s93 = sphi 0, %s93
      %s95 = sphi 0, %s93
      %s96 = sphi 0, %s95
      %s110 = sphi 0, %s96
      %s114 = sphi 0, %s114
      %s116 = sphi 0, %s114
      %s117 = sphi 0, %s116
      %s131 = sphi 0, %s117
      %s135 = sphi 0, %s135
      %s137 = sphi 0, %s135
      %s138 = sphi 0, %s137
      %s152 = sphi 0, %s138
      %s156 = sphi 0, %s156
      %s158 = sphi 0, %s156
      %s159 = sphi 0, %s158
      %s173 = sphi 0, %s159
      %s179 = sphi 0, %s181
      %s182 = sphi 0, %s179
      %s183 = sphi 0, %s182
      %s199 = sphi 0, %s183
    $region4: #{tpu_custom_call.1} parent=1 // loop_header_branch
      %20 = sbr.rel (%p18) target = $region8
    $region5: #{tpu_custom_call.1} parent=1 // loop_body
      %s22 = ssub.s32 %s17, 1
      %s23 = ssub.s32 %s17, 2
      %s24 = sadd.s32 %s17, 1
      %s25 = ssub.s32 %s17, %s24
      %p26 = scmp.eq.s32.totalorder %s25, 0
      %s28 = sadd.s32 %s27, 1
      %s29 = scalar_select %p26, %s27, %s28
      %p32 = pneg %p26
      %p33 = scmp.eq.s32.totalorder %s17, 1
      %p34 = por %p32, %p33
      %p35 = scmp.ne.s32.totalorder %s27, %s30
      %p36 = scmp.eq.s32.totalorder %s17, 0
      %p37 = por %p35, %p36
      %p38 = scmp.ne.s32.totalorder %s27, %s30
      %p39 = scmp.eq.s32.totalorder %s22, 1
      %p40 = por %p38, %p39
      %p41 = scmp.ne.s32.totalorder %s30, %s31
      %p42 = scmp.eq.s32.totalorder %s22, 0
      %p43 = por %p41, %p42
      %p44 = scmp.ne.s32.totalorder %s30, %s31
      %p45 = scmp.eq.s32.totalorder %s23, 1
      %p46 = por %p44, %p45
      %p48 = scmp.ne.s32.totalorder %s31, %s47
      %p49 = scmp.eq.s32.totalorder %s23, 0
      %p50 = por %p48, %p49
      %s52 = sadd.s32 %s51, 1
      %p55 = scmp.eq.s32.totalorder %s17, 1
      %p56 = scmp.ne.s32.totalorder %s51, %s53
      %p57 = scmp.eq.s32.totalorder %s17, 0
      %p58 = por %p56, %p57
      %p59 = scmp.ne.s32.totalorder %s51, %s53
      %p60 = scmp.eq.s32.totalorder %s22, 1
      %p61 = por %p59, %p60
      %p62 = scmp.ne.s32.totalorder %s53, %s54
      %p63 = scmp.eq.s32.totalorder %s22, 0
      %p64 = por %p62, %p63
      %p65 = scmp.ne.s32.totalorder %s53, %s54
      %p66 = scmp.eq.s32.totalorder %s23, 1
      %p67 = por %p65, %p66
      %p69 = scmp.ne.s32.totalorder %s54, %s68
      %p70 = scmp.eq.s32.totalorder %s23, 0
      %p71 = por %p69, %p70
      %s73 = sadd.s32 %s72, 1
      %p76 = scmp.eq.s32.totalorder %s17, 1
      %p77 = scmp.ne.s32.totalorder %s72, %s74
      %p78 = scmp.eq.s32.totalorder %s17, 0
      %p79 = por %p77, %p78
      %p80 = scmp.ne.s32.totalorder %s72, %s74
      %p81 = scmp.eq.s32.totalorder %s22, 1
      %p82 = por %p80, %p81
      %p83 = scmp.ne.s32.totalorder %s74, %s75
      %p84 = scmp.eq.s32.totalorder %s22, 0
      %p85 = por %p83, %p84
      %p86 = scmp.ne.s32.totalorder %s74, %s75
      %p87 = scmp.eq.s32.totalorder %s23, 1
      %p88 = por %p86, %p87
      %p90 = scmp.ne.s32.totalorder %s75, %s89
      %p91 = scmp.eq.s32.totalorder %s23, 0
      %p92 = por %p90, %p91
      %s94 = sadd.s32 %s93, 1
      %p97 = scmp.eq.s32.totalorder %s17, 1
      %p98 = scmp.ne.s32.totalorder %s93, %s95
      %p99 = scmp.eq.s32.totalorder %s17, 0
      %p100 = por %p98, %p99
      %p101 = scmp.ne.s32.totalorder %s93, %s95
      %p102 = scmp.eq.s32.totalorder %s22, 1
      %p103 = por %p101, %p102
      %p104 = scmp.ne.s32.totalorder %s95, %s96
      %p105 = scmp.eq.s32.totalorder %s22, 0
      %p106 = por %p104, %p105
      %p107 = scmp.ne.s32.totalorder %s95, %s96
      %p108 = scmp.eq.s32.totalorder %s23, 1
      %p109 = por %p107, %p108
      %p111 = scmp.ne.s32.totalorder %s96, %s110
      %p112 = scmp.eq.s32.totalorder %s23, 0
      %p113 = por %p111, %p112
      %s115 = sadd.s32 %s114, 1
      %p118 = scmp.eq.s32.totalorder %s17, 1
      %p119 = scmp.ne.s32.totalorder %s114, %s116
      %p120 = scmp.eq.s32.totalorder %s17, 0
      %p121 = por %p119, %p120
      %p122 = scmp.ne.s32.totalorder %s114, %s116
      %p123 = scmp.eq.s32.totalorder %s22, 1
      %p124 = por %p122, %p123
      %p125 = scmp.ne.s32.totalorder %s116, %s117
      %p126 = scmp.eq.s32.totalorder %s22, 0
      %p127 = por %p125, %p126
      %p128 = scmp.ne.s32.totalorder %s116, %s117
      %p129 = scmp.eq.s32.totalorder %s23, 1
      %p130 = por %p128, %p129
      %p132 = scmp.ne.s32.totalorder %s117, %s131
      %p133 = scmp.eq.s32.totalorder %s23, 0
      %p134 = por %p132, %p133
      %s136 = sadd.s32 %s135, 1
      %p139 = scmp.eq.s32.totalorder %s17, 1
      %p140 = scmp.ne.s32.totalorder %s135, %s137
      %p141 = scmp.eq.s32.totalorder %s17, 0
      %p142 = por %p140, %p141
      %p143 = scmp.ne.s32.totalorder %s135, %s137
      %p144 = scmp.eq.s32.totalorder %s22, 1
      %p145 = por %p143, %p144
      %p146 = scmp.ne.s32.totalorder %s137, %s138
      %p147 = scmp.eq.s32.totalorder %s22, 0
      %p148 = por %p146, %p147
      %p149 = scmp.ne.s32.totalorder %s137, %s138
      %p150 = scmp.eq.s32.totalorder %s23, 1
      %p151 = por %p149, %p150
      %p153 = scmp.ne.s32.totalorder %s138, %s152
      %p154 = scmp.eq.s32.totalorder %s23, 0
      %p155 = por %p153, %p154
      %s157 = sadd.s32 %s156, 1
      %p160 = scmp.eq.s32.totalorder %s17, 1
      %p161 = scmp.ne.s32.totalorder %s156, %s158
      %p162 = scmp.eq.s32.totalorder %s17, 0
      %p163 = por %p161, %p162
      %p164 = scmp.ne.s32.totalorder %s156, %s158
      %p165 = scmp.eq.s32.totalorder %s22, 1
      %p166 = por %p164, %p165
      %p167 = scmp.ne.s32.totalorder %s158, %s159
      %p168 = scmp.eq.s32.totalorder %s22, 0
      %p169 = por %p167, %p168
      %p170 = scmp.ne.s32.totalorder %s158, %s159
      %p171 = scmp.eq.s32.totalorder %s23, 1
      %p172 = por %p170, %p171
      %p174 = scmp.ne.s32.totalorder %s159, %s173
      %p175 = scmp.eq.s32.totalorder %s23, 0
      %p176 = por %p174, %p175
      %s177 = ssub.s32 %s17, %s24
      %p178 = scmp.eq.s32.totalorder %s177, 0
      %s180 = sadd.s32 %s179, 1
      %s181 = scalar_select %p178, %s179, %s180
      %p184 = pneg %p178
      %p185 = scmp.eq.s32.totalorder %s17, 1
      %p186 = por %p184, %p185
      %p187 = scmp.ne.s32.totalorder %s179, %s182
      %p188 = scmp.eq.s32.totalorder %s17, 0
      %p189 = por %p187, %p188
      %p190 = scmp.ne.s32.totalorder %s179, %s182
      %p191 = scmp.eq.s32.totalorder %s22, 1
      %p192 = por %p190, %p191
      %p193 = scmp.ne.s32.totalorder %s182, %s183
      %p194 = scmp.eq.s32.totalorder %s22, 0
      %p195 = por %p193, %p194
      %p196 = scmp.ne.s32.totalorder %s182, %s183
      %p197 = scmp.eq.s32.totalorder %s23, 1
      %p198 = por %p196, %p197
      %p200 = scmp.ne.s32.totalorder %s183, %s199
      %p201 = scmp.eq.s32.totalorder %s23, 0
      %p202 = por %p200, %p201
      %p203 = scmp.le.s32.totalorder 1, %s17
      %p204 = scmp.lt.s32.totalorder %s17, 3
      %p205 = pnand %p203, %p204
      %p206 = pneg %p205
      // Predicated region
      $region9: #{tpu_custom_call.1} parent=5 // pred_check
        _
      $region10: #{tpu_custom_call.1} parent=5 // pred_check_branch
        %208 = sbr.rel (%p205) target = $region12
      $region11: #{tpu_custom_call.1} parent=5 // pred_region
        %s209 = ssub.s32 %s17, 1
        // Predicated region
        $region13: #{tpu_custom_call.1} parent=11 // pred_check
          %p210 = pneg %p64
        $region14: #{tpu_custom_call.1} parent=11 // pred_check_branch
          %212 = sbr.rel (%p210) target = $region16
        $region15: #{tpu_custom_call.1} parent=11 // pred_region
          %s214 = ssub.s32 2048, 2048
          %215 = vsyncadd [#allocation3], %s214
          %s216 = sshll.u32 [#allocation2], 4
          %s217 = int_to_ptr.vmem [resolvable:$true] %s216
          %222 = dma.hbm_to_vmem [thread:$0]  %s1, 2048, %s217, [#allocation3], 64, 64, 4
        $region16: #{tpu_custom_call.1} parent=11 // pred_fallthru
          _
        // Predicated region
        $region17: #{tpu_custom_call.1} parent=11 // pred_check
          %p223 = pneg %p85
        $region18: #{tpu_custom_call.1} parent=11 // pred_check_branch
          %225 = sbr.rel (%p223) target = $region20
        $region19: #{tpu_custom_call.1} parent=11 // pred_region
          _
        $region20: #{tpu_custom_call.1} parent=11 // pred_fallthru
          _
        // Predicated region
        $region21: #{tpu_custom_call.1} parent=11 // pred_check
          %p226 = pneg %p106
        $region22: #{tpu_custom_call.1} parent=11 // pred_check_branch
          %228 = sbr.rel (%p226) target = $region24
        $region23: #{tpu_custom_call.1} parent=11 // pred_region
          _
        $region24: #{tpu_custom_call.1} parent=11 // pred_fallthru
          _
        // Predicated region
        $region25: #{tpu_custom_call.1} parent=11 // pred_check
          %p229 = pneg %p127
        $region26: #{tpu_custom_call.1} parent=11 // pred_check_branch
          %231 = sbr.rel (%p229) target = $region28
        $region27: #{tpu_custom_call.1} parent=11 // pred_region
          _
        $region28: #{tpu_custom_call.1} parent=11 // pred_fallthru
          _
        // Predicated region
        $region29: #{tpu_custom_call.1} parent=11 // pred_check
          %p232 = pneg %p148
        $region30: #{tpu_custom_call.1} parent=11 // pred_check_branch
          %234 = sbr.rel (%p232) target = $region32
        $region31: #{tpu_custom_call.1} parent=11 // pred_region
          _
        $region32: #{tpu_custom_call.1} parent=11 // pred_fallthru
          _
        // Predicated region
        $region33: #{tpu_custom_call.1} parent=11 // pred_check
          %p235 = pneg %p169
        $region34: #{tpu_custom_call.1} parent=11 // pred_check_branch
          %237 = sbr.rel (%p235) target = $region36
        $region35: #{tpu_custom_call.1} parent=11 // pred_region
          _
        $region36: #{tpu_custom_call.1} parent=11 // pred_fallthru
          _
      $region12: #{tpu_custom_call.1} parent=5 // pred_fallthru
        _
      %p238 = scmp.lt.s32.totalorder %s17, 2
      // Predicated region
      $region37: #{tpu_custom_call.1} parent=5 // pred_check
        %p239 = pneg %p238
      $region38: #{tpu_custom_call.1} parent=5 // pred_check_branch
        %241 = sbr.rel (%p239) target = $region40
      $region39: #{tpu_custom_call.1} parent=5 // pred_region
        // Predicated region
        $region41: #{tpu_custom_call.1} parent=39 // pred_check
          %p242 = pneg %p37
        $region42: #{tpu_custom_call.1} parent=39 // pred_check_branch
          %244 = sbr.rel (%p242) target = $region44
        $region43: #{tpu_custom_call.1} parent=39 // pred_region
          %s245 = smul.u32 2, %s17
          %p246 = scmp.lt.s32.totalorder %s245, 3
          %s247 = scalar_select %p246, %s245, 3
          %s248 = smul.addr %s247, 2
          %s249 = smul.addr %s248, 4
          %s250 = scalar_lea.vmem %s0, %s249
          %s251 = smul.u32 2, %s17
        $region44: #{tpu_custom_call.1} parent=39 // pred_fallthru
          _
      $region40: #{tpu_custom_call.1} parent=5 // pred_fallthru
        _
      %p252 = scmp.le.s32.totalorder 1, %s17
      %p253 = scmp.lt.s32.totalorder %s17, 3
      %p254 = pnand %p252, %p253
      %p255 = pneg %p254
      // Predicated region
      $region45: #{tpu_custom_call.1} parent=5 // pred_check
        _
      $region46: #{tpu_custom_call.1} parent=5 // pred_check_branch
        %257 = sbr.rel (%p254) target = $region48
      $region47: #{tpu_custom_call.1} parent=5 // pred_region
        %s258 = ssub.s32 %s17, 1
        // Predicated region
        $region49: #{tpu_custom_call.1} parent=47 // pred_check
          %p259 = pneg %p64
        $region50: #{tpu_custom_call.1} parent=47 // pred_check_branch
          %261 = sbr.rel (%p259) target = $region52
        $region51: #{tpu_custom_call.1} parent=47 // pred_region
          %262 = dma.done [#allocation3], 2048
        $region52: #{tpu_custom_call.1} parent=47 // pred_fallthru
          _
        %s263 = smul.u32 2, %s22
        %p264 = scmp.lt.s32.totalorder %s263, 3
        %s265 = scalar_select %p264, %s263, 3
        %s266 = smul.addr %s265, 2
        %s267 = smul.addr %s266, 4
        %s268 = scalar_lea.vmem %s0, %s267
        %p269 = pneg %p43
        %p270 = pneg %p40
        %p271 = pneg %p64
        %p272 = pneg %p61
        %p273 = pneg %p85
        %p274 = pneg %p82
        %p275 = pneg %p106
        %p276 = pneg %p103
        %p277 = pneg %p127
        %p278 = pneg %p124
        %p279 = pneg %p148
        %p280 = pneg %p145
        %p281 = pneg %p169
        %p282 = pneg %p166
        %p283 = pneg %p195
        %p284 = pneg %p192
        %s285 = sand.u32 %s182, 1
        %s286 = scalar_lea.sflag [#allocation4], %s285
        %s287 = sand.u32 %s182, 1
        %s288 = smul.addr %s287, 16
        %s289 = scalar_lea.vmem [#allocation5], %s288
        %s290 = smul.u32 2, %s22
        %p291 = scmp.lt.s32.totalorder %s290, 3
        %s292 = scalar_select %p291, %s290, 3
        %s293 = smul.addr %s292, 2
        %s294 = smul.addr %s293, 4
        %s295 = scalar_lea.vmem %s0, %s294
        %s296 = smul.u32 2, %s22
        %s297 = smul.u32 2, %s22
        %v299 = vld [vmem:[%s295] sm:$0xff]
        %v300 = vld [vmem:[%s295 + $0x8] sm:$0xff]
        %v301 = vld [vmem:[#allocation2] sm:$0xf]
        %v302 = vld [vmem:[#allocation2 + $0x4] sm:$0xf]
        %v303 = vld [vmem:[#allocation2 + $0x8] sm:$0xf]
        %v304 = vld [vmem:[#allocation2 + $0xc] sm:$0xf]
        %v305 = vld [vmem:[#allocation2 + $0x10] sm:$0xf]
        %v306 = vld [vmem:[#allocation2 + $0x14] sm:$0xf]
        %v307 = vld [vmem:[#allocation2 + $0x18] sm:$0xf]
        %v308 = vld [vmem:[#allocation2 + $0x1c] sm:$0xf]
        %v309 = vld [vmem:[#allocation2 + $0x20] sm:$0xf]
        %v310 = vld [vmem:[#allocation2 + $0x24] sm:$0xf]
        %v311 = vld [vmem:[#allocation2 + $0x28] sm:$0xf]
        %v312 = vld [vmem:[#allocation2 + $0x2c] sm:$0xf]
        %v313 = vld [vmem:[#allocation2 + $0x30] sm:$0xf]
        %v314 = vld [vmem:[#allocation2 + $0x34] sm:$0xf]
        %v315 = vld [vmem:[#allocation2 + $0x38] sm:$0xf]
        %v316 = vld [vmem:[#allocation2 + $0x3c] sm:$0xf]
        %v317 = vld [vmem:[#allocation2 + $0x40] sm:$0xf]
        %v318 = vld [vmem:[#allocation2 + $0x44] sm:$0xf]
        %v319 = vld [vmem:[#allocation2 + $0x48] sm:$0xf]
        %v320 = vld [vmem:[#allocation2 + $0x4c] sm:$0xf]
        %v321 = vld [vmem:[#allocation2 + $0x50] sm:$0xf]
        %v322 = vld [vmem:[#allocation2 + $0x54] sm:$0xf]
        %v323 = vld [vmem:[#allocation2 + $0x58] sm:$0xf]
        %v324 = vld [vmem:[#allocation2 + $0x5c] sm:$0xf]
        %v325 = vld [vmem:[#allocation2 + $0x60] sm:$0xf]
        %v326 = vld [vmem:[#allocation2 + $0x64] sm:$0xf]
        %v327 = vld [vmem:[#allocation2 + $0x68] sm:$0xf]
        %v328 = vld [vmem:[#allocation2 + $0x6c] sm:$0xf]
        %v329 = vld [vmem:[#allocation2 + $0x70] sm:$0xf]
        %v330 = vld [vmem:[#allocation2 + $0x74] sm:$0xf]
        %v331 = vld [vmem:[#allocation2 + $0x78] sm:$0xf]
        %v332 = vld [vmem:[#allocation2 + $0x7c] sm:$0xf]
        %v333 = vld [vmem:[%s2] sm:$0x1]
        %v335 = vlaneseq
        %v336 = vshrl.u32 %v335, 7
        %v337 = vsub.s32 0, %v336
        %v338 = vrot.slane %v333, %v337
        %v342 = vunpack.c.l.b16 %v299
        %v343 = vunpack.c.h.b16 %v299
        %v344 = vunpack.c.l.b16 %v300
        %v345 = vunpack.c.h.b16 %v300
        %v346 = vpack.c.b16 %v344, %v342
        %v347 = vpack.c.b16 %v345, %v343
        %v382 = vunpack.c.l.b16 %v301
        %v383 = vunpack.c.l.b16 %v302
        %v384 = vunpack.c.l.b16 %v303
        %v385 = vunpack.c.l.b16 %v304
        %v386 = vunpack.c.l.b16 %v305
        %v387 = vunpack.c.l.b16 %v306
        %v388 = vunpack.c.l.b16 %v307
        %v389 = vunpack.c.l.b16 %v308
        %v390 = vunpack.c.l.b16 %v309
        %v391 = vunpack.c.l.b16 %v310
        %v392 = vunpack.c.l.b16 %v311
        %v393 = vunpack.c.l.b16 %v312
        %v394 = vunpack.c.l.b16 %v313
        %v395 = vunpack.c.l.b16 %v314
        %v396 = vunpack.c.l.b16 %v315
        %v397 = vunpack.c.l.b16 %v316
        %v398 = vunpack.c.l.b16 %v317
        %v399 = vunpack.c.l.b16 %v318
        %v400 = vunpack.c.l.b16 %v319
        %v401 = vunpack.c.l.b16 %v320
        %v402 = vunpack.c.l.b16 %v321
        %v403 = vunpack.c.l.b16 %v322
        %v404 = vunpack.c.l.b16 %v323
        %v405 = vunpack.c.l.b16 %v324
        %v406 = vunpack.c.l.b16 %v325
        %v407 = vunpack.c.l.b16 %v326
        %v408 = vunpack.c.l.b16 %v327
        %v409 = vunpack.c.l.b16 %v328
        %v410 = vunpack.c.l.b16 %v329
        %v411 = vunpack.c.l.b16 %v330
        %v412 = vunpack.c.l.b16 %v331
        %v413 = vunpack.c.l.b16 %v332
        %v414 = vpack.c.b16 %v383, %v382
        %v415 = vpack.c.b16 %v385, %v384
        %v416 = vpack.c.b16 %v387, %v386
        %v417 = vpack.c.b16 %v389, %v388
        %v418 = vpack.c.b16 %v391, %v390
        %v419 = vpack.c.b16 %v393, %v392
        %v420 = vpack.c.b16 %v395, %v394
        %v421 = vpack.c.b16 %v397, %v396
        %v422 = vpack.c.b16 %v399, %v398
        %v423 = vpack.c.b16 %v401, %v400
        %v424 = vpack.c.b16 %v403, %v402
        %v425 = vpack.c.b16 %v405, %v404
        %v426 = vpack.c.b16 %v407, %v406
        %v427 = vpack.c.b16 %v409, %v408
        %v428 = vpack.c.b16 %v411, %v410
        %v429 = vpack.c.b16 %v413, %v412
        %446 = vmatprep.subr.bf16.mxu0 0
        %447 = vmatpush1.bf16.msra.mxu0 %v414
        %448 = vmatprep.subr.bf16.mxu0 0
        %449 = vmatpush1.bf16.msra.mxu0 %v415
        %450 = vmatprep.subr.bf16.mxu0 0
        %451 = vmatpush1.bf16.msra.mxu0 %v416
        %452 = vmatprep.subr.bf16.mxu0 0
        %453 = vmatpush1.bf16.msra.mxu0 %v417
        %454 = vmatprep.subr.bf16.mxu0 0
        %455 = vmatpush1.bf16.msra.mxu0 %v418
        %456 = vmatprep.subr.bf16.mxu0 0
        %457 = vmatpush1.bf16.msra.mxu0 %v419
        %458 = vmatprep.subr.bf16.mxu0 0
        %459 = vmatpush1.bf16.msra.mxu0 %v420
        %460 = vmatprep.subr.bf16.mxu0 0
        %461 = vmatpush1.bf16.msra.mxu0 %v421
        %462 = vmatprep.subr.bf16.mxu0 0
        %463 = vmatpush1.bf16.msra.mxu0 %v422
        %464 = vmatprep.subr.bf16.mxu0 0
        %465 = vmatpush1.bf16.msra.mxu0 %v423
        %466 = vmatprep.subr.bf16.mxu0 0
        %467 = vmatpush1.bf16.msra.mxu0 %v424
        %468 = vmatprep.subr.bf16.mxu0 0
        %469 = vmatpush1.bf16.msra.mxu0 %v425
        %470 = vmatprep.subr.bf16.mxu0 0
        %471 = vmatpush1.bf16.msra.mxu0 %v426
        %472 = vmatprep.subr.bf16.mxu0 0
        %473 = vmatpush1.bf16.msra.mxu0 %v427
        %474 = vmatprep.subr.bf16.mxu0 0
        %475 = vmatpush1.bf16.msra.mxu0 %v428
        %476 = vmatprep.subr.bf16.mxu0 0
        %477 = vmatpush1.bf16.msra.mxu0 %v429
        %478 = vmatprep.mubr.bf16.mxu0 %v347
        %479 = vmatmul.mubr.bf16.gmra.mrb[0].mxu0 %v346
        %v480 = vpop.f32.mrb[0].mxu0
        %v481 = vadd.f32 %v338, %v480
        %v482 = vpop.f32.mrb[0].mxu0
        %v483 = vpop.f32.mrb[0].mxu0
        %v484 = vadd.f32 %v338, %v483
        %v485 = vpop.f32.mrb[0].mxu0
        %486 = vdwg.mxu0
        %v487 = vmax.f32 %v481, 0.0
        %v488 = vmax.f32 %v484, 0.0
        %v489 = vpack.c.bf16 %v488, %v487
        %v490 = vld [vmem:[%s3] sm:$0xf]
        %v491 = vld [vmem:[%s3 + $0x4] sm:$0xf]
        %v492 = vld [vmem:[%s3 + $0x8] sm:$0xf]
        %v493 = vld [vmem:[%s3 + $0xc] sm:$0xf]
        %v494 = vld [vmem:[%s3 + $0x10] sm:$0xf]
        %v495 = vld [vmem:[%s3 + $0x14] sm:$0xf]
        %v496 = vld [vmem:[%s3 + $0x18] sm:$0xf]
        %v497 = vld [vmem:[%s3 + $0x1c] sm:$0xf]
        %v498 = vld [vmem:[%s3 + $0x20] sm:$0xf]
        %v499 = vld [vmem:[%s3 + $0x24] sm:$0xf]
        %v500 = vld [vmem:[%s3 + $0x28] sm:$0xf]
        %v501 = vld [vmem:[%s3 + $0x2c] sm:$0xf]
        %v502 = vld [vmem:[%s3 + $0x30] sm:$0xf]
        %v503 = vld [vmem:[%s3 + $0x34] sm:$0xf]
        %v504 = vld [vmem:[%s3 + $0x38] sm:$0xf]
        %v505 = vld [vmem:[%s3 + $0x3c] sm:$0xf]
        %v506 = vld [vmem:[%s4] sm:$0x1]
        %v508 = vlaneseq
        %v509 = vshrl.u32 %v508, 7
        %v510 = vsub.s32 0, %v509
        %v511 = vrot.slane %v506, %v510
        %v529 = vunpack.c.l.b16 %v490
        %v530 = vunpack.c.l.b16 %v491
        %v531 = vunpack.c.l.b16 %v492
        %v532 = vunpack.c.l.b16 %v493
        %v533 = vunpack.c.l.b16 %v494
        %v534 = vunpack.c.l.b16 %v495
        %v535 = vunpack.c.l.b16 %v496
        %v536 = vunpack.c.l.b16 %v497
        %v537 = vunpack.c.l.b16 %v498
        %v538 = vunpack.c.l.b16 %v499
        %v539 = vunpack.c.l.b16 %v500
        %v540 = vunpack.c.l.b16 %v501
        %v541 = vunpack.c.l.b16 %v502
        %v542 = vunpack.c.l.b16 %v503
        %v543 = vunpack.c.l.b16 %v504
        %v544 = vunpack.c.l.b16 %v505
        %v545 = vpack.c.b16 %v530, %v529
        %v546 = vpack.c.b16 %v532, %v531
        %v547 = vpack.c.b16 %v534, %v533
        %v548 = vpack.c.b16 %v536, %v535
        %v549 = vpack.c.b16 %v538, %v537
        %v550 = vpack.c.b16 %v540, %v539
        %v551 = vpack.c.b16 %v542, %v541
        %v552 = vpack.c.b16 %v544, %v543
        %561 = vmatprep.subr.bf16.mxu0 0
        %562 = vmatpush1.bf16.msra.mxu0 %v545
        %563 = vmatprep.subr.bf16.mxu0 0
        %564 = vmatpush1.bf16.msra.mxu0 %v546
        %565 = vmatprep.subr.bf16.mxu0 0
        %566 = vmatpush1.bf16.msra.mxu0 %v547
        %567 = vmatprep.subr.bf16.mxu0 0
        %568 = vmatpush1.bf16.msra.mxu0 %v548
        %569 = vmatprep.subr.bf16.mxu0 0
        %570 = vmatpush1.bf16.msra.mxu0 %v549
        %571 = vmatprep.subr.bf16.mxu0 0
        %572 = vmatpush1.bf16.msra.mxu0 %v550
        %573 = vmatprep.subr.bf16.mxu0 0
        %574 = vmatpush1.bf16.msra.mxu0 %v551
        %575 = vmatprep.subr.bf16.mxu0 0
        %576 = vmatpush1.bf16.msra.mxu0 %v552
        %577 = vmatprep.subr.bf16.mxu0 0
        %578 = vmatpush1.bf16.msra.mxu0 0
        %579 = vmatprep.subr.bf16.mxu0 0
        %580 = vmatpush1.bf16.msra.mxu0 0
        %581 = vmatprep.subr.bf16.mxu0 0
        %582 = vmatpush1.bf16.msra.mxu0 0
        %583 = vmatprep.subr.bf16.mxu0 0
        %584 = vmatpush1.bf16.msra.mxu0 0
        %585 = vmatprep.subr.bf16.mxu0 0
        %586 = vmatpush1.bf16.msra.mxu0 0
        %587 = vmatprep.subr.bf16.mxu0 0
        %588 = vmatpush1.bf16.msra.mxu0 0
        %589 = vmatprep.subr.bf16.mxu0 0
        %590 = vmatpush1.bf16.msra.mxu0 0
        %591 = vmatprep.subr.bf16.mxu0 0
        %592 = vmatpush1.bf16.msra.mxu0 0
        %593 = vmatprep.mubr.bf16.mxu0 0
        %594 = vmatmul.mubr.bf16.gmra.mrb[0].mxu0 %v489
        %v595 = vpop.f32.mrb[0].mxu0
        %v596 = vadd.f32 %v511, %v595
        %v597 = vpop.f32.mrb[0].mxu0
        %v598 = vpop.f32.mrb[0].mxu0
        %v599 = vadd.f32 %v511, %v598
        %v600 = vpop.f32.mrb[0].mxu0
        %601 = vdwg.mxu0
        %v602 = vmax.f32 %v596, 0.0
        %v603 = vmax.f32 %v599, 0.0
        %v604 = vpack.c.bf16 %v603, %v602
        %v605 = vld [vmem:[%s5] sm:$0xf]
        %v606 = vld [vmem:[%s5 + $0x4] sm:$0xf]
        %v607 = vld [vmem:[%s5 + $0x8] sm:$0xf]
        %v608 = vld [vmem:[%s5 + $0xc] sm:$0xf]
        %v609 = vld [vmem:[%s5 + $0x10] sm:$0xf]
        %v610 = vld [vmem:[%s5 + $0x14] sm:$0xf]
        %v611 = vld [vmem:[%s5 + $0x18] sm:$0xf]
        %v612 = vld [vmem:[%s5 + $0x1c] sm:$0xf]
        %v613 = vld [vmem:[%s6] sm:$0x1]
        %v615 = vlaneseq
        %v616 = vshrl.u32 %v615, 7
        %v617 = vsub.s32 0, %v616
        %v618 = vrot.slane %v613, %v617
        %v628 = vunpack.c.l.b16 %v605
        %v629 = vunpack.c.l.b16 %v606
        %v630 = vunpack.c.l.b16 %v607
        %v631 = vunpack.c.l.b16 %v608
        %v632 = vunpack.c.l.b16 %v609
        %v633 = vunpack.c.l.b16 %v610
        %v634 = vunpack.c.l.b16 %v611
        %v635 = vunpack.c.l.b16 %v612
        %v636 = vpack.c.b16 %v629, %v628
        %v637 = vpack.c.b16 %v631, %v630
        %v638 = vpack.c.b16 %v633, %v632
        %v639 = vpack.c.b16 %v635, %v634
        %vm644 = vcmask 523264
        %v646 = vsel %vm644, %v604, 0
        %648 = vmatprep.subr.bf16.mxu0 0
        %649 = vmatpush1.bf16.msra.mxu0 %v636
        %650 = vmatprep.subr.bf16.mxu0 0
        %651 = vmatpush1.bf16.msra.mxu0 %v637
        %652 = vmatprep.subr.bf16.mxu0 0
        %653 = vmatpush1.bf16.msra.mxu0 %v638
        %654 = vmatprep.subr.bf16.mxu0 0
        %655 = vmatpush1.bf16.msra.mxu0 %v639
        %656 = vmatprep.subr.bf16.mxu0 0
        %657 = vmatpush1.bf16.msra.mxu0 0
        %658 = vmatprep.subr.bf16.mxu0 0
        %659 = vmatpush1.bf16.msra.mxu0 0
        %660 = vmatprep.subr.bf16.mxu0 0
        %661 = vmatpush1.bf16.msra.mxu0 0
        %662 = vmatprep.subr.bf16.mxu0 0
        %663 = vmatpush1.bf16.msra.mxu0 0
        %664 = vmatprep.subr.bf16.mxu0 0
        %665 = vmatpush1.bf16.msra.mxu0 0
        %666 = vmatprep.subr.bf16.mxu0 0
        %667 = vmatpush1.bf16.msra.mxu0 0
        %668 = vmatprep.subr.bf16.mxu0 0
        %669 = vmatpush1.bf16.msra.mxu0 0
        %670 = vmatprep.subr.bf16.mxu0 0
        %671 = vmatpush1.bf16.msra.mxu0 0
        %672 = vmatprep.subr.bf16.mxu0 0
        %673 = vmatpush1.bf16.msra.mxu0 0
        %674 = vmatprep.subr.bf16.mxu0 0
        %675 = vmatpush1.bf16.msra.mxu0 0
        %676 = vmatprep.subr.bf16.mxu0 0
        %677 = vmatpush1.bf16.msra.mxu0 0
        %678 = vmatprep.subr.bf16.mxu0 0
        %679 = vmatpush1.bf16.msra.mxu0 0
        %680 = vmatprep.mubr.bf16.mxu0 0
        %681 = vmatmul.mubr.bf16.gmra.mrb[0].mxu0 %v646
        %v682 = vpop.f32.mrb[0].mxu0
        %v683 = vadd.f32 %v618, %v682
        %v684 = vpop.f32.mrb[0].mxu0
        %v685 = vpop.f32.mrb[0].mxu0
        %v686 = vadd.f32 %v618, %v685
        %v687 = vpop.f32.mrb[0].mxu0
        %688 = vdwg.mxu0
        %689 = vst [vmem:[%s289] sm:$0xff] %v683
        %690 = vst [vmem:[%s289 + $0x8] sm:$0xff] %v686
        %s691 = sand.u32 %s182, 1
        %s692 = scalar_lea.sflag [#allocation4], %s691
        %s693 = sand.u32 %s182, 1
        %s694 = smul.addr %s693, 16
        %s695 = scalar_lea.vmem [#allocation5], %s694
        // Predicated region
        $region53: #{tpu_custom_call.1} parent=47 // pred_check
          %p696 = pneg %p192
        $region54: #{tpu_custom_call.1} parent=47 // pred_check_branch
          %698 = sbr.rel (%p696) target = $region56
        $region55: #{tpu_custom_call.1} parent=47 // pred_region
          %s699 = smul.u32 2, %s22
          %s701 = ssub.s32 256, 256
          %702 = vsyncadd %s692, %s701
          %s703 = smul.addr %s699, 128
          %s704 = scalar_lea.hbm %s7, %s703
          %s705 = sshll.u32 %s695, 4
          %s706 = int_to_ptr.vmem [resolvable:$true] %s705
          %711 = dma.vmem_to_hbm [thread:$0]  %s706, 256, %s704, %s692, 128, 128, 8
        $region56: #{tpu_custom_call.1} parent=47 // pred_fallthru
          _
      $region48: #{tpu_custom_call.1} parent=5 // pred_fallthru
        _
      %p712 = scmp.le.s32.totalorder 2, %s17
      // Predicated region
      $region57: #{tpu_custom_call.1} parent=5 // pred_check
        %p713 = pneg %p712
      $region58: #{tpu_custom_call.1} parent=5 // pred_check_branch
        %715 = sbr.rel (%p713) target = $region60
      $region59: #{tpu_custom_call.1} parent=5 // pred_region
        %s716 = ssub.s32 %s17, 2
        // Predicated region
        $region61: #{tpu_custom_call.1} parent=59 // pred_check
          %p717 = pneg %p198
        $region62: #{tpu_custom_call.1} parent=59 // pred_check_branch
          %719 = sbr.rel (%p717) target = $region64
        $region63: #{tpu_custom_call.1} parent=59 // pred_region
          %s720 = sand.u32 %s183, 1
          %s721 = scalar_lea.sflag [#allocation4], %s720
          %s722 = sand.u32 %s183, 1
          %s723 = smul.addr %s722, 16
          %s724 = scalar_lea.vmem [#allocation5], %s723
          %725 = dma.done %s721, 256
        $region64: #{tpu_custom_call.1} parent=59 // pred_fallthru
          _
      $region60: #{tpu_custom_call.1} parent=5 // pred_fallthru
        _
    $region6: #{tpu_custom_call.1} parent=1 // loop_footer
      %s21 = sadd.s32 1, %s17
    $region7: #{tpu_custom_call.1} parent=1 // loop_footer_branch
      %16 = sbr.rel target = $region3
    $region8: #{tpu_custom_call.1} parent=1 // loop_exit
      _
    %726 = vsyncpa [#allocation3], 1
    %s727 = scalar_lea.sflag [#allocation3], 1
    %728 = vsyncpa %s727, 1
    %729 = vsyncpa [#allocation4], 1
    %s730 = scalar_lea.sflag [#allocation4], 1
    %731 = vsyncpa %s730, 1

</llo_original>
